<compile_context>
chip_gen: v6e
topology: v6e:2x2x1
jax: 0.10.0
libtpu: 0.0.40
codegen_flags: <defaults>
</compile_context>

<pallas_src>
import jax
import jax.numpy as jnp
from jax.experimental import pallas as pl
from jax.experimental.pallas import tpu as pltpu


def graphconv_kernel(ai_ref, z_ref, drow_ref, out_ref, acc_ref):
    """Grid = (row stripes, K tiles).  acc[i] += AI[i, k] @ Z[k]; epilogue at last k."""
    k = pl.program_id(1)

    @pl.when(k == 0)
    def _():
        acc_ref[...] = jnp.zeros_like(acc_ref)

    # AI tile arrives from HBM in a narrow dtype (bf16 is exact for the 0/1/2
    # entries of A+I); upcast in-register so the accumulation is pure f32.
    acc_ref[...] += jnp.dot(
        ai_ref[...].astype(jnp.float32),
        z_ref[...],
        preferred_element_type=jnp.float32,
    )

    @pl.when(k == pl.num_programs(1) - 1)
    def _():
        # H = (D @ AI @ Z) for this row stripe: row-scale by d, then relu+softmax
        # over the feature axis (dim=1 of the 2-D output).
        H = drow_ref[...] * acc_ref[...]
        H = jnp.maximum(H, 0.0)
        m = jnp.max(H, axis=-1, keepdims=True)
        e = jnp.exp(H - m)
        inv = pl.reciprocal(jnp.sum(e, axis=-1, keepdims=True), approx=True)
        out_ref[...] = (e * inv).astype(out_ref.dtype)


def _round_up(x, m):
    return ((x + m - 1) // m) * m


def graph_conv_forward(AI, d, X, W, *, tm=None, tk=None, ai_dtype=jnp.bfloat16):
    """Pallas-backed forward.  d = diag(D) as a length-N vector.

    Returns (out, X) exactly like the nn.Module's forward().

    ai_dtype: storage dtype used to stream AI from HBM.  bf16/int8 are exact
    for binary adjacencies (A+I entries in {0,1,2}); pass jnp.float32 for
    weighted graphs.
    """
    N = AI.shape[0]
    F = X.shape[1]

    # Hoisted once (tiny: N*F floats):  Z = D @ X @ W  with D diagonal.
    Z = (d.reshape(N, 1).astype(jnp.float32) *
         jnp.dot(X.astype(jnp.float32), W.astype(jnp.float32)))

    # Tile sizes.  Sublane alignment of the AI block depends on its dtype
    # (f32: 8, bf16: 16, int8/fp8: 32); lane (K) tiles must be multiples of 128.
    itemsize = jnp.dtype(ai_dtype).itemsize
    sub_align = {1: 32, 2: 16, 4: 8}[itemsize]
    if tm is None:
        tm = 512
    if tk is None:
        tk = 512
    tm = min(_round_up(tm, sub_align), _round_up(N, sub_align))
    tk = min(_round_up(tk, 128), _round_up(N, 128))

    # Pad so blocks divide exactly (zero padding: padded K columns add exact
    # zeros to the accumulator; padded rows stay finite and are sliced off).
    Nr = _round_up(N, tm)
    Nc = _round_up(N, tk)
    AI_p = jnp.pad(AI.astype(ai_dtype), ((0, Nr - N), (0, Nc - N)))
    Z_p = jnp.pad(Z, ((0, Nc - N), (0, 0)))
    d2 = jnp.pad(d.reshape(N, 1).astype(jnp.float32), ((0, Nr - N), (0, 0)))

    grid = (Nr // tm, Nc // tk)

    out = pl.pallas_call(
        graphconv_kernel,
        out_shape=jax.ShapeDtypeStruct((Nr, F), jnp.float32),
        grid=grid,
        in_specs=[
            pl.BlockSpec((tm, tk), lambda i, k: (i, k)),  # AI tile (streamed, narrow dtype)
            pl.BlockSpec((tk, F), lambda i, k: (k, 0)),   # Z K-slice (tiny)
            pl.BlockSpec((tm, 1), lambda i, k: (i, 0)),   # d row stripe (output scaling)
        ],
        out_specs=pl.BlockSpec((tm, F), lambda i, k: (i, 0)),  # resident across k
        scratch_shapes=[pltpu.VMEM((tm, F), jnp.float32)],      # f32 accumulator
        compiler_params=pltpu.CompilerParams(
            dimension_semantics=("parallel", "arbitrary"),
            vmem_limit_bytes=48 * 1024 * 1024,  # < 64 MiB/TC on v7x, plenty on v5e/v6e
        ),
    )(AI_p, Z_p, d2)

    return out[:N], X


if __name__ == "__main__":
    key = jax.random.PRNGKey(0)
    k_a, k_x, k_w = jax.random.split(key, 3)

    # Small-but-nontrivial graph; N deliberately not a multiple of the tiles so
    # the padding path is exercised, and the grid is 2x2 (row-parallel + K acc).
    N, Fdim = 200, 2          # W is (2, 2) in the module -> feature dim is 2
    TM, TK = 128, 128

    # Deterministic synthetic graph: symmetric 0/1 adjacency, zero diagonal.
    upper = (jax.random.uniform(k_a, (N, N)) > 0.5).astype(jnp.float32)
    A = jnp.triu(upper, 1)
    A = A + A.T

    # Mirrors __init__:
    AI = A + jnp.eye(N, dtype=jnp.float32)               # A + I
    deg = jnp.sum(AI, axis=0)
    d = deg ** (-0.5)                                     # diag(D)
    X = jax.random.normal(k_x, (N, Fdim), dtype=jnp.float32)      # learned_X
    W = jax.random.normal(k_w, (Fdim, Fdim), dtype=jnp.float32)   # learned_W
    # TODO(synk): the `labels` buffer is registered but unused in forward() -> omitted.

    out, X_ret = graph_conv_forward(AI, d, X, W, tm=TM, tk=TK)
    jax.block_until_ready(out)

    # Plain-JAX reference, matching the PyTorch left-associative chain.
    D = jnp.diag(d)
    ref = D @ AI @ D @ X @ W
    ref = jax.nn.softmax(jnp.maximum(ref, 0.0), axis=1)

    assert out.shape == (N, Fdim)
    # Tolerance loosened slightly: re-association + approx EUP reciprocal
    # change rounding vs. the exact left-associative f32 chain.
    assert jnp.allclose(out, ref, atol=2e-3, rtol=2e-3), float(
        jnp.max(jnp.abs(out - ref))
    )
    assert jnp.allclose(X_ret, X)

    print("KERNEL_OK")
</pallas_src>

<mosaic_0001>
module attributes {stable_mosaic.version = 11 : i64} {
  func.func @graphconv_kernel(%arg0: i32, %arg1: i32, %arg2: memref<128x128xbf16, #tpu.memory_space<vmem>>, %arg3: memref<128x2xf32, #tpu.memory_space<vmem>>, %arg4: memref<128x1xf32, #tpu.memory_space<vmem>>, %arg5: memref<128x2xf32, #tpu.memory_space<vmem>>, %arg6: memref<128x2xf32, #tpu.memory_space<vmem>>) attributes {dimension_semantics = [#tpu.dimension_semantics<parallel>, #tpu.dimension_semantics<arbitrary>], iteration_bounds = array<i64: 2, 2>, scalar_prefetch = 0 : i64, scratch_operands = 1 : i64, tpu.core_type = #tpu.core_type<tc>, window_params = [{transform_indices = @transform_0, window_bounds = array<i64: 128, 128>}, {transform_indices = @transform_1, window_bounds = array<i64: 128, 2>}, {transform_indices = @transform_2, window_bounds = array<i64: 128, 1>}, {transform_indices = @transform_3, window_bounds = array<i64: 128, 2>}]} {
    %c0_i32 = arith.constant 0 : i32
    %0 = arith.cmpi eq, %arg1, %c0_i32 : i32
    %1 = arith.extui %0 : i1 to i32
    %c0_i32_0 = arith.constant 0 : i32
    %2 = arith.cmpi ne, %1, %c0_i32_0 : i32
    scf.if %2 {
      %cst_9 = arith.constant 0.000000e+00 : f32
      %13 = vector.broadcast %cst_9 : f32 to vector<128x2xf32>
      %c0_10 = arith.constant 0 : index
      %c0_11 = arith.constant 0 : index
      %14 = vector.load %arg6[%c0_10, %c0_11] : memref<128x2xf32, #tpu.memory_space<vmem>>, vector<128x2xf32>
      tpu.vector_store %arg6[%c0_10, %c0_11], %13 {strides = array<i32>} : memref<128x2xf32, #tpu.memory_space<vmem>>, vector<128x2xf32>,
    } else {
    }
    %c0 = arith.constant 0 : index
    %c0_1 = arith.constant 0 : index
    %3 = vector.load %arg6[%c0, %c0_1] : memref<128x2xf32, #tpu.memory_space<vmem>>, vector<128x2xf32>
    %c0_2 = arith.constant 0 : index
    %c0_3 = arith.constant 0 : index
    %4 = vector.load %arg2[%c0_2, %c0_3] : memref<128x128xbf16, #tpu.memory_space<vmem>>, vector<128x128xbf16>
    %5 = arith.extf %4 : vector<128x128xbf16> to vector<128x128xf32>
    %c0_4 = arith.constant 0 : index
    %c0_5 = arith.constant 0 : index
    %6 = vector.load %arg3[%c0_4, %c0_5] : memref<128x2xf32, #tpu.memory_space<vmem>>, vector<128x2xf32>
    %cst = arith.constant dense<0.000000e+00> : vector<128x2xf32>
    %7 = tpu.matmul %5, %6, %cst {dimension_numbers = #tpu.dot_dimension_numbers<[1], [0], [0], [1], [0, 0, 1, 1], [], []>} : vector<128x128xf32>, vector<128x2xf32>, vector<128x2xf32> -> vector<128x2xf32>
    %8 = arith.addf %3, %7 : vector<128x2xf32>
    %c0_6 = arith.constant 0 : index
    %c0_7 = arith.constant 0 : index
    %9 = vector.load %arg6[%c0_6, %c0_7] : memref<128x2xf32, #tpu.memory_space<vmem>>, vector<128x2xf32>
    tpu.vector_store %arg6[%c0_6, %c0_7], %8 {strides = array<i32>} : memref<128x2xf32, #tpu.memory_space<vmem>>, vector<128x2xf32>,
    %c1_i32 = arith.constant 1 : i32
    %10 = arith.cmpi eq, %arg1, %c1_i32 : i32
    %11 = arith.extui %10 : i1 to i32
    %c0_i32_8 = arith.constant 0 : i32
    %12 = arith.cmpi ne, %11, %c0_i32_8 : i32
    scf.if %12 {
      %c0_9 = arith.constant 0 : index
      %c0_10 = arith.constant 0 : index
      %13 = vector.load %arg4[%c0_9, %c0_10] : memref<128x1xf32, #tpu.memory_space<vmem>>, vector<128x1xf32>
      %c0_11 = arith.constant 0 : index
      %c0_12 = arith.constant 0 : index
      %14 = vector.load %arg6[%c0_11, %c0_12] : memref<128x2xf32, #tpu.memory_space<vmem>>, vector<128x2xf32>
      %15 = vector.broadcast %13 : vector<128x1xf32> to vector<128x2xf32>
      %16 = arith.mulf %15, %14 : vector<128x2xf32>
      %cst_13 = arith.constant 0.000000e+00 : f32
      %17 = vector.broadcast %cst_13 : f32 to vector<128x2xf32>
      %18 = arith.maximumf %16, %17 : vector<128x2xf32>
      %cst_14 = arith.constant dense<0xFF800000> : vector<128xf32>
      %19 = vector.multi_reduction <maximumf>, %18, %cst_14 [1] : vector<128x2xf32> to vector<128xf32>
      %20 = vector.shape_cast %19 : vector<128xf32> to vector<128x1xf32>
      %21 = vector.broadcast %20 : vector<128x1xf32> to vector<128x2xf32>
      %22 = arith.subf %18, %21 : vector<128x2xf32>
      %23 = math.exp %22 : vector<128x2xf32>
      %cst_15 = arith.constant dense<0.000000e+00> : vector<128xf32>
      %24 = vector.multi_reduction <add>, %23, %cst_15 [1] : vector<128x2xf32> to vector<128xf32>
      %25 = vector.shape_cast %24 : vector<128xf32> to vector<128x1xf32>
      %26 = tpu.reciprocal %25 {approx = true} : vector<128x1xf32> -> vector<128x1xf32>
      %27 = vector.broadcast %26 : vector<128x1xf32> to vector<128x2xf32>
      %28 = arith.mulf %23, %27 : vector<128x2xf32>
      %c0_16 = arith.constant 0 : index
      %c0_17 = arith.constant 0 : index
      %29 = vector.load %arg5[%c0_16, %c0_17] : memref<128x2xf32, #tpu.memory_space<vmem>>, vector<128x2xf32>
      tpu.vector_store %arg5[%c0_16, %c0_17], %28 {strides = array<i32>} : memref<128x2xf32, #tpu.memory_space<vmem>>, vector<128x2xf32>,
    } else {
    }
    return
  }
  func.func @transform_0(%arg0: i32, %arg1: i32) -> (i32, i32) {
    %c0_i32 = arith.constant 0 : i32
    return %arg0, %arg1 : i32, i32
  }
  func.func @transform_1(%arg0: i32, %arg1: i32) -> (i32, i32) {
    %c0_i32 = arith.constant 0 : i32
    %c0_i32_0 = arith.constant 0 : i32
    return %arg1, %c0_i32 : i32, i32
  }
  func.func @transform_2(%arg0: i32, %arg1: i32) -> (i32, i32) {
    %c0_i32 = arith.constant 0 : i32
    %c0_i32_0 = arith.constant 0 : i32
    return %arg0, %c0_i32 : i32, i32
  }
  func.func @transform_3(%arg0: i32, %arg1: i32) -> (i32, i32) {
    %c0_i32 = arith.constant 0 : i32
    %c0_i32_0 = arith.constant 0 : i32
    return %arg0, %c0_i32 : i32, i32
  }
}

</mosaic_0001>

<llo_original>
// kernel: tpu_custom_call.1
$region0: #{tpu_custom_call.1}
  #allocation0 [shape = 'u32[]', space=smem, size = 0x4, offset = 0x4, fixed_abs, tag = 'smem constant byte address 0x4 - core index']
  #allocation1 [shape = 'u32[144,128]{1,0:T(1,128)}', space=vmem, size = 0x12000, scoped, tag = 'internal scratch']
  #allocation2 [shape = 'f32[128,2]{1,0:T(8,128)}', space=vmem, size = 0x10000, scoped, tag = 'scratch operand']
  %s0 = inlined_call_operand.vmem [shape: bf16[256,256], index: 0, kind: input, shape index: {}]
  %s1 = inlined_call_operand.vmem [shape: f32[256,2], index: 1, kind: input, shape index: {}]
  %s2 = inlined_call_operand.vmem [shape: f32[256,1], index: 2, kind: input, shape index: {}]
  %s3 = inlined_call_operand.vmem [shape: f32[256,2], index: 3, kind: output, shape index: {}]
  %s4 = sld [smem:[#allocation0]]
  $region94: #{tpu_custom_call.1} parent=0
    _
  %s6 = ssub.s32 1, %s4
  %s7 = scalar_select 0, %s6, %s4
  $region1: #{tpu_custom_call.1} parent=0
    #allocation3 [shape = 'u8[65536]{0}', space=vmem, size = 0x10000, scoped, tag = 'input window, operand 0']
    loop: start=0, step=1, limit=6
    $region2: #{tpu_custom_call.1} parent=1 // loop_pre_header
      _
    $region3: #{tpu_custom_call.1} parent=1 // loop_header
      %s9 = sphi 0, %s13
      %p10 = scmp.ge.s32.totalorder %s9, 6
      %s16 = sphi 0, %s28
      %s17 = sphi 0, %s24
      %s18 = sphi 0, %s16
      %s19 = sphi 0, %s17
      %s20 = sphi 0, %s18
      %s21 = sphi 0, %s19
      %s33 = sphi 0, %s35
      %s36 = sphi 0, %s33
      %s37 = sphi 0, %s36
      %s53 = sphi 0, %s37
      %s59 = sphi 0, %s61
      %s62 = sphi 0, %s59
      %s63 = sphi 0, %s62
      %s79 = sphi 0, %s63
      %s85 = sphi 0, %s87
      %s88 = sphi 0, %s85
      %s89 = sphi 0, %s88
      %s105 = sphi 0, %s89
      %s111 = sphi 0, %s113
      %s114 = sphi 0, %s111
      %s115 = sphi 0, %s114
      %s131 = sphi 0, %s115
    $region4: #{tpu_custom_call.1} parent=1 // loop_header_branch
      %12 = sbr.rel (%p10) target = $region8
    $region5: #{tpu_custom_call.1} parent=1 // loop_body
      %s14 = ssub.s32 %s9, 1
      %s15 = ssub.s32 %s9, 2
      %s22 = sadd.s32 1, %s17
      %p23 = scmp.ge.s32.totalorder %s22, 2
      %s24 = scalar_select %p23, 0, %s22
      %s25 = sadd.s32 1, %s16
      %s26 = scalar_select %p23, %s25, %s16
      %p27 = scmp.ge.s32.totalorder %s26, 2
      %s28 = scalar_select %p27, 0, %s26
      %s29 = ssub.s32 %s16, %s28
      %s30 = ssub.s32 %s17, %s24
      %s31 = sor.u32 %s29, %s30
      %p32 = scmp.eq.s32.totalorder %s31, 0
      %s34 = sadd.s32 %s33, 1
      %s35 = scalar_select %p32, %s33, %s34
      %p38 = pneg %p32
      %p39 = scmp.eq.s32.totalorder %s9, 3
      %p40 = por %p38, %p39
      %p41 = scmp.ne.s32.totalorder %s33, %s36
      %p42 = scmp.eq.s32.totalorder %s9, 0
      %p43 = por %p41, %p42
      %p44 = scmp.ne.s32.totalorder %s33, %s36
      %p45 = scmp.eq.s32.totalorder %s14, 3
      %p46 = por %p44, %p45
      %p47 = scmp.ne.s32.totalorder %s36, %s37
      %p48 = scmp.eq.s32.totalorder %s14, 0
      %p49 = por %p47, %p48
      %p50 = scmp.ne.s32.totalorder %s36, %s37
      %p51 = scmp.eq.s32.totalorder %s15, 3
      %p52 = por %p50, %p51
      %p54 = scmp.ne.s32.totalorder %s37, %s53
      %p55 = scmp.eq.s32.totalorder %s15, 0
      %p56 = por %p54, %p55
      %s57 = ssub.s32 %s17, %s24
      %p58 = scmp.eq.s32.totalorder %s57, 0
      %s60 = sadd.s32 %s59, 1
      %s61 = scalar_select %p58, %s59, %s60
      %p64 = pneg %p58
      %p65 = scmp.eq.s32.totalorder %s9, 3
      %p66 = por %p64, %p65
      %p67 = scmp.ne.s32.totalorder %s59, %s62
      %p68 = scmp.eq.s32.totalorder %s9, 0
      %p69 = por %p67, %p68
      %p70 = scmp.ne.s32.totalorder %s59, %s62
      %p71 = scmp.eq.s32.totalorder %s14, 3
      %p72 = por %p70, %p71
      %p73 = scmp.ne.s32.totalorder %s62, %s63
      %p74 = scmp.eq.s32.totalorder %s14, 0
      %p75 = por %p73, %p74
      %p76 = scmp.ne.s32.totalorder %s62, %s63
      %p77 = scmp.eq.s32.totalorder %s15, 3
      %p78 = por %p76, %p77
      %p80 = scmp.ne.s32.totalorder %s63, %s79
      %p81 = scmp.eq.s32.totalorder %s15, 0
      %p82 = por %p80, %p81
      %s83 = ssub.s32 %s16, %s28
      %p84 = scmp.eq.s32.totalorder %s83, 0
      %s86 = sadd.s32 %s85, 1
      %s87 = scalar_select %p84, %s85, %s86
      %p90 = pneg %p84
      %p91 = scmp.eq.s32.totalorder %s9, 3
      %p92 = por %p90, %p91
      %p93 = scmp.ne.s32.totalorder %s85, %s88
      %p94 = scmp.eq.s32.totalorder %s9, 0
      %p95 = por %p93, %p94
      %p96 = scmp.ne.s32.totalorder %s85, %s88
      %p97 = scmp.eq.s32.totalorder %s14, 3
      %p98 = por %p96, %p97
      %p99 = scmp.ne.s32.totalorder %s88, %s89
      %p100 = scmp.eq.s32.totalorder %s14, 0
      %p101 = por %p99, %p100
      %p102 = scmp.ne.s32.totalorder %s88, %s89
      %p103 = scmp.eq.s32.totalorder %s15, 3
      %p104 = por %p102, %p103
      %p106 = scmp.ne.s32.totalorder %s89, %s105
      %p107 = scmp.eq.s32.totalorder %s15, 0
      %p108 = por %p106, %p107
      %s109 = ssub.s32 %s16, %s28
      %p110 = scmp.eq.s32.totalorder %s109, 0
      %s112 = sadd.s32 %s111, 1
      %s113 = scalar_select %p110, %s111, %s112
      %p116 = pneg %p110
      %p117 = scmp.eq.s32.totalorder %s9, 3
      %p118 = por %p116, %p117
      %p119 = scmp.ne.s32.totalorder %s111, %s114
      %p120 = scmp.eq.s32.totalorder %s9, 0
      %p121 = por %p119, %p120
      %p122 = scmp.ne.s32.totalorder %s111, %s114
      %p123 = scmp.eq.s32.totalorder %s14, 3
      %p124 = por %p122, %p123
      %p125 = scmp.ne.s32.totalorder %s114, %s115
      %p126 = scmp.eq.s32.totalorder %s14, 0
      %p127 = por %p125, %p126
      %p128 = scmp.ne.s32.totalorder %s114, %s115
      %p129 = scmp.eq.s32.totalorder %s15, 3
      %p130 = por %p128, %p129
      %p132 = scmp.ne.s32.totalorder %s115, %s131
      %p133 = scmp.eq.s32.totalorder %s15, 0
      %p134 = por %p132, %p133
      %p135 = scmp.le.s32.totalorder 1, %s9
      %p136 = scmp.lt.s32.totalorder %s9, 5
      %p137 = pnand %p135, %p136
      %p138 = pneg %p137
      // Predicated region
      $region9: #{tpu_custom_call.1} parent=5 // pred_check
        _
      $region10: #{tpu_custom_call.1} parent=5 // pred_check_branch
        %140 = sbr.rel (%p137) target = $region12
      $region11: #{tpu_custom_call.1} parent=5 // pred_region
        %s141 = ssub.s32 %s9, 1
      $region12: #{tpu_custom_call.1} parent=5 // pred_fallthru
        _
      %p142 = scmp.lt.s32.totalorder %s9, 4
      // Predicated region
      $region13: #{tpu_custom_call.1} parent=5 // pred_check
        %p143 = pneg %p142
      $region14: #{tpu_custom_call.1} parent=5 // pred_check_branch
        %145 = sbr.rel (%p143) target = $region16
      $region15: #{tpu_custom_call.1} parent=5 // pred_region
        // Predicated region
        $region17: #{tpu_custom_call.1} parent=15 // pred_check
          %p146 = pneg %p43
        $region18: #{tpu_custom_call.1} parent=15 // pred_check_branch
          %148 = sbr.rel (%p146) target = $region20
        $region19: #{tpu_custom_call.1} parent=15 // pred_region
          %s149 = sand.u32 %s33, 1
          %s150 = sand.u32 %s33, 1
          %s151 = smul.addr %s150, 64
          %s152 = scalar_lea.vmem [#allocation3], %s151
          %s153 = smul.u32 16, %s16
          %s154 = smul.addr %s153, 2
          %s155 = sadd.s32 %s17, %s154
          %s156 = smul.addr %s155, 4
          %s157 = scalar_lea.vmem %s0, %s156
          // Predicated region
          $region21: #{tpu_custom_call.1} parent=19 // pred_check
            _
          $region22: #{tpu_custom_call.1} parent=19 // pred_check_branch
            %159 = sbr.rel (0) target = $region24
          $region23: #{tpu_custom_call.1} parent=19 // pred_region
            // Predicated region
            $region25: #{tpu_custom_call.1} parent=23 // pred_check
              _
            $region26: #{tpu_custom_call.1} parent=23 // pred_check_branch
              %161 = sbr.rel target = $region28
            $region27: #{tpu_custom_call.1} parent=23 // pred_region
              // Predicated region
              $region40: #{tpu_custom_call.1} parent=27 // pred_check
                _
              $region41: #{tpu_custom_call.1} parent=27 // pred_check_branch
                %207 = sbr.rel (0) target = $region43
              $region42: #{tpu_custom_call.1} parent=27 // pred_region
                loop: start=0, step=1, limit=1
                $region44: #{tpu_custom_call.1} parent=42 // loop_pre_header
                  _
                $region45: #{tpu_custom_call.1} parent=42 // loop_header
                  %s209 = sphi 0, %s213
                  %p210 = scmp.ge.s32.totalorder %s209, 1
                  %s214 = sphi %s157, %s157
                  %s215 = sphi %s152, %s152
                $region46: #{tpu_custom_call.1} parent=42 // loop_header_branch
                  %212 = sbr.rel (%p210) target = $region50
                $region47: #{tpu_custom_call.1} parent=42 // loop_body
                  _
                $region48: #{tpu_custom_call.1} parent=42 // loop_footer
                  %s213 = sadd.s32 1, %s209
                $region49: #{tpu_custom_call.1} parent=42 // loop_footer_branch
                  %208 = sbr.rel target = $region45
                $region50: #{tpu_custom_call.1} parent=42 // loop_exit
                  _
                %s217 = ssub.s32 16, 1
                loop: start=0, step=1, limit=1
                $region51: #{tpu_custom_call.1} parent=42 // loop_pre_header
                  _
                $region52: #{tpu_custom_call.1} parent=42 // loop_header
                  %s219 = sphi 0, %s223
                  %p220 = scmp.ge.s32.totalorder %s219, 1
                  %s224 = sphi %s157, %s157
                  %s225 = sphi %s152, %s152
                $region53: #{tpu_custom_call.1} parent=42 // loop_header_branch
                  %222 = sbr.rel (%p220) target = $region57
                $region54: #{tpu_custom_call.1} parent=42 // loop_body
                  %v226 = vld [vmem:[%s224] sm:%s217]
                  %227 = vst [vmem:[%s225] sm:%s217] %v226
                  %v228 = vld [vmem:[%s224 + $0x8] sm:%s217]
                  %229 = vst [vmem:[%s225 + $0x4] sm:%s217] %v228
                  %v230 = vld [vmem:[%s224 + $0x10] sm:%s217]
                  %231 = vst [vmem:[%s225 + $0x8] sm:%s217] %v230
                  %v232 = vld [vmem:[%s224 + $0x18] sm:%s217]
                  %233 = vst [vmem:[%s225 + $0xc] sm:%s217] %v232
                  %v234 = vld [vmem:[%s224 + $0x20] sm:%s217]
                  %235 = vst [vmem:[%s225 + $0x10] sm:%s217] %v234
                  %v236 = vld [vmem:[%s224 + $0x28] sm:%s217]
                  %237 = vst [vmem:[%s225 + $0x14] sm:%s217] %v236
                  %v238 = vld [vmem:[%s224 + $0x30] sm:%s217]
                  %239 = vst [vmem:[%s225 + $0x18] sm:%s217] %v238
                  %v240 = vld [vmem:[%s224 + $0x38] sm:%s217]
                  %241 = vst [vmem:[%s225 + $0x1c] sm:%s217] %v240
                  %v242 = vld [vmem:[%s224 + $0x40] sm:%s217]
                  %243 = vst [vmem:[%s225 + $0x20] sm:%s217] %v242
                  %v244 = vld [vmem:[%s224 + $0x48] sm:%s217]
                  %245 = vst [vmem:[%s225 + $0x24] sm:%s217] %v244
                  %v246 = vld [vmem:[%s224 + $0x50] sm:%s217]
                  %247 = vst [vmem:[%s225 + $0x28] sm:%s217] %v246
                  %v248 = vld [vmem:[%s224 + $0x58] sm:%s217]
                  %249 = vst [vmem:[%s225 + $0x2c] sm:%s217] %v248
                  %v250 = vld [vmem:[%s224 + $0x60] sm:%s217]
                  %251 = vst [vmem:[%s225 + $0x30] sm:%s217] %v250
                  %v252 = vld [vmem:[%s224 + $0x68] sm:%s217]
                  %253 = vst [vmem:[%s225 + $0x34] sm:%s217] %v252
                  %v254 = vld [vmem:[%s224 + $0x70] sm:%s217]
                  %255 = vst [vmem:[%s225 + $0x38] sm:%s217] %v254
                  %v256 = vld [vmem:[%s224 + $0x78] sm:%s217]
                  %257 = vst [vmem:[%s225 + $0x3c] sm:%s217] %v256
                $region55: #{tpu_custom_call.1} parent=42 // loop_footer
                  %s223 = sadd.s32 1, %s219
                $region56: #{tpu_custom_call.1} parent=42 // loop_footer_branch
                  %218 = sbr.rel target = $region52
                $region57: #{tpu_custom_call.1} parent=42 // loop_exit
                  _
              $region43: #{tpu_custom_call.1} parent=27 // pred_fallthru
                _
            $region28: #{tpu_custom_call.1} parent=23 // pred_fallthru
              _
            // Predicated region
            $region29: #{tpu_custom_call.1} parent=23 // pred_check
              _
            $region30: #{tpu_custom_call.1} parent=23 // pred_check_branch
              %163 = sbr.rel (0) target = $region32
            $region31: #{tpu_custom_call.1} parent=23 // pred_region
              %s165 = ssub.s32 16, 1
              loop: start=0, step=1, limit=1
              $region33: #{tpu_custom_call.1} parent=31 // loop_pre_header
                _
              $region34: #{tpu_custom_call.1} parent=31 // loop_header
                %s167 = sphi 0, %s171
                %p168 = scmp.ge.s32.totalorder %s167, 1
                %s172 = sphi %s157, %s157
                %s173 = sphi %s152, %s152
              $region35: #{tpu_custom_call.1} parent=31 // loop_header_branch
                %170 = sbr.rel (%p168) target = $region39
              $region36: #{tpu_custom_call.1} parent=31 // loop_body
                %v174 = vld [vmem:[%s172] sm:%s165]
                %175 = vst [vmem:[%s173] sm:%s165] %v174
                %v176 = vld [vmem:[%s172 + $0x8] sm:%s165]
                %177 = vst [vmem:[%s173 + $0x4] sm:%s165] %v176
                %v178 = vld [vmem:[%s172 + $0x10] sm:%s165]
                %179 = vst [vmem:[%s173 + $0x8] sm:%s165] %v178
                %v180 = vld [vmem:[%s172 + $0x18] sm:%s165]
                %181 = vst [vmem:[%s173 + $0xc] sm:%s165] %v180
                %v182 = vld [vmem:[%s172 + $0x20] sm:%s165]
                %183 = vst [vmem:[%s173 + $0x10] sm:%s165] %v182
                %v184 = vld [vmem:[%s172 + $0x28] sm:%s165]
                %185 = vst [vmem:[%s173 + $0x14] sm:%s165] %v184
                %v186 = vld [vmem:[%s172 + $0x30] sm:%s165]
                %187 = vst [vmem:[%s173 + $0x18] sm:%s165] %v186
                %v188 = vld [vmem:[%s172 + $0x38] sm:%s165]
                %189 = vst [vmem:[%s173 + $0x1c] sm:%s165] %v188
                %v190 = vld [vmem:[%s172 + $0x40] sm:%s165]
                %191 = vst [vmem:[%s173 + $0x20] sm:%s165] %v190
                %v192 = vld [vmem:[%s172 + $0x48] sm:%s165]
                %193 = vst [vmem:[%s173 + $0x24] sm:%s165] %v192
                %v194 = vld [vmem:[%s172 + $0x50] sm:%s165]
                %195 = vst [vmem:[%s173 + $0x28] sm:%s165] %v194
                %v196 = vld [vmem:[%s172 + $0x58] sm:%s165]
                %197 = vst [vmem:[%s173 + $0x2c] sm:%s165] %v196
                %v198 = vld [vmem:[%s172 + $0x60] sm:%s165]
                %199 = vst [vmem:[%s173 + $0x30] sm:%s165] %v198
                %v200 = vld [vmem:[%s172 + $0x68] sm:%s165]
                %201 = vst [vmem:[%s173 + $0x34] sm:%s165] %v200
                %v202 = vld [vmem:[%s172 + $0x70] sm:%s165]
                %203 = vst [vmem:[%s173 + $0x38] sm:%s165] %v202
                %v204 = vld [vmem:[%s172 + $0x78] sm:%s165]
                %205 = vst [vmem:[%s173 + $0x3c] sm:%s165] %v204
              $region37: #{tpu_custom_call.1} parent=31 // loop_footer
                %s171 = sadd.s32 1, %s167
              $region38: #{tpu_custom_call.1} parent=31 // loop_footer_branch
                %166 = sbr.rel target = $region34
              $region39: #{tpu_custom_call.1} parent=31 // loop_exit
                _
            $region32: #{tpu_custom_call.1} parent=23 // pred_fallthru
              _
          $region24: #{tpu_custom_call.1} parent=19 // pred_fallthru
            _
          %258 = vnop
        $region20: #{tpu_custom_call.1} parent=15 // pred_fallthru
          _
        // Predicated region
        $region58: #{tpu_custom_call.1} parent=15 // pred_check
          %p259 = pneg %p69
        $region59: #{tpu_custom_call.1} parent=15 // pred_check_branch
          %261 = sbr.rel (%p259) target = $region61
        $region60: #{tpu_custom_call.1} parent=15 // pred_region
          %s262 = smul.u32 16, %s17
          %p263 = scmp.lt.s32.totalorder %s262, 31
          %s264 = scalar_select %p263, %s262, 31
          %s265 = smul.addr %s264, 8
          %s266 = scalar_lea.vmem %s1, %s265
          %s267 = smul.u32 16, %s17
        $region61: #{tpu_custom_call.1} parent=15 // pred_fallthru
          _
        // Predicated region
        $region62: #{tpu_custom_call.1} parent=15 // pred_check
          %p268 = pneg %p95
        $region63: #{tpu_custom_call.1} parent=15 // pred_check_branch
          %270 = sbr.rel (%p268) target = $region65
        $region64: #{tpu_custom_call.1} parent=15 // pred_region
          %s271 = smul.u32 16, %s16
          %p272 = scmp.lt.s32.totalorder %s271, 31
          %s273 = scalar_select %p272, %s271, 31
          %s274 = smul.addr %s273, 8
          %s275 = scalar_lea.vmem %s2, %s274
          %s276 = smul.u32 16, %s16
        $region65: #{tpu_custom_call.1} parent=15 // pred_fallthru
          _
      $region16: #{tpu_custom_call.1} parent=5 // pred_fallthru
        _
      %p277 = scmp.le.s32.totalorder 1, %s9
      %p278 = scmp.lt.s32.totalorder %s9, 5
      %p279 = pnand %p277, %p278
      %p280 = pneg %p279
      // Predicated region
      $region66: #{tpu_custom_call.1} parent=5 // pred_check
        _
      $region67: #{tpu_custom_call.1} parent=5 // pred_check_branch
        %282 = sbr.rel (%p279) target = $region69
      $region68: #{tpu_custom_call.1} parent=5 // pred_region
        %s283 = ssub.s32 %s9, 1
        %s284 = sand.u32 %s36, 1
        %s285 = sand.u32 %s36, 1
        %s286 = smul.addr %s285, 64
        %s287 = scalar_lea.vmem [#allocation3], %s286
        // Predicated region
        $region70: #{tpu_custom_call.1} parent=68 // pred_check
          %p288 = pneg %p49
        $region71: #{tpu_custom_call.1} parent=68 // pred_check_branch
          %290 = sbr.rel (%p288) target = $region73
        $region72: #{tpu_custom_call.1} parent=68 // pred_region
          _
        $region73: #{tpu_custom_call.1} parent=68 // pred_fallthru
          _
        %s291 = sand.u32 %s36, 1
        %s292 = sand.u32 %s36, 1
        %s293 = smul.addr %s292, 64
        %s294 = scalar_lea.vmem [#allocation3], %s293
        %p295 = pneg %p49
        %p296 = pneg %p46
        %s297 = smul.u32 16, %s19
        %p298 = scmp.lt.s32.totalorder %s297, 31
        %s299 = scalar_select %p298, %s297, 31
        %s300 = smul.addr %s299, 8
        %s301 = scalar_lea.vmem %s1, %s300
        %p302 = pneg %p75
        %p303 = pneg %p72
        %s304 = smul.u32 16, %s18
        %p305 = scmp.lt.s32.totalorder %s304, 31
        %s306 = scalar_select %p305, %s304, 31
        %s307 = smul.addr %s306, 8
        %s308 = scalar_lea.vmem %s2, %s307
        %p309 = pneg %p101
        %p310 = pneg %p98
        %p311 = pneg %p127
        %p312 = pneg %p124
        %s313 = smul.u32 16, %s18
        %p314 = scmp.lt.s32.totalorder %s313, 31
        %s315 = scalar_select %p314, %s313, 31
        %s316 = smul.addr %s315, 8
        %s317 = scalar_lea.vmem %s3, %s316
        %s318 = smul.u32 16, %s18
        %s319 = smul.u32 16, %s19
        %p320 = scmp.lt.s32.totalorder %s319, 31
        %s321 = scalar_select %p320, %s319, 31
        %s322 = smul.addr %s321, 8
        %s323 = scalar_lea.vmem %s1, %s322
        %s324 = smul.u32 16, %s19
        %s325 = smul.u32 16, %s18
        %p326 = scmp.lt.s32.totalorder %s325, 31
        %s327 = scalar_select %p326, %s325, 31
        %s328 = smul.addr %s327, 8
        %s329 = scalar_lea.vmem %s2, %s328
        %s330 = smul.u32 16, %s18
        %s331 = smul.u32 16, %s18
        %p332 = scmp.lt.s32.totalorder %s331, 31
        %s333 = scalar_select %p332, %s331, 31
        %s334 = smul.addr %s333, 8
        %s335 = scalar_lea.vmem %s3, %s334
        %s336 = smul.u32 16, %s18
        %p337 = scmp.eq.s32.totalorder %s19, 0
        // Predicated region
        $region74: #{tpu_custom_call.1} parent=68 // pred_check
          %p338 = pneg %p337
        $region75: #{tpu_custom_call.1} parent=68 // pred_check_branch
          %340 = sbr.rel (%p338) target = $region77
        $region76: #{tpu_custom_call.1} parent=68 // pred_region
          %vm341 = vcmask 15360
          %342 = vst.msk [vmem:[#allocation2] sm:$0xff] %vm341, 0.0
          %343 = vst.msk [vmem:[#allocation2 + $0x8] sm:$0xff] %vm341, 0.0
          %344 = vst.msk [vmem:[#allocation2 + $0x10] sm:$0xff] %vm341, 0.0
          %345 = vst.msk [vmem:[#allocation2 + $0x18] sm:$0xff] %vm341, 0.0
          %346 = vst.msk [vmem:[#allocation2 + $0x20] sm:$0xff] %vm341, 0.0
          %347 = vst.msk [vmem:[#allocation2 + $0x28] sm:$0xff] %vm341, 0.0
          %348 = vst.msk [vmem:[#allocation2 + $0x30] sm:$0xff] %vm341, 0.0
          %349 = vst.msk [vmem:[#allocation2 + $0x38] sm:$0xff] %vm341, 0.0
          %350 = vst.msk [vmem:[#allocation2 + $0x40] sm:$0xff] %vm341, 0.0
          %351 = vst.msk [vmem:[#allocation2 + $0x48] sm:$0xff] %vm341, 0.0
          %352 = vst.msk [vmem:[#allocation2 + $0x50] sm:$0xff] %vm341, 0.0
          %353 = vst.msk [vmem:[#allocation2 + $0x58] sm:$0xff] %vm341, 0.0
          %354 = vst.msk [vmem:[#allocation2 + $0x60] sm:$0xff] %vm341, 0.0
          %355 = vst.msk [vmem:[#allocation2 + $0x68] sm:$0xff] %vm341, 0.0
          %356 = vst.msk [vmem:[#allocation2 + $0x70] sm:$0xff] %vm341, 0.0
          %357 = vst.msk [vmem:[#allocation2 + $0x78] sm:$0xff] %vm341, 0.0
        $region77: #{tpu_custom_call.1} parent=68 // pred_fallthru
          _
        %v358 = vld [vmem:[#allocation2] sm:$0xff]
        %v359 = vld [vmem:[#allocation2 + $0x8] sm:$0xff]
        %v360 = vld [vmem:[#allocation2 + $0x10] sm:$0xff]
        %v361 = vld [vmem:[#allocation2 + $0x18] sm:$0xff]
        %v362 = vld [vmem:[#allocation2 + $0x20] sm:$0xff]
        %v363 = vld [vmem:[#allocation2 + $0x28] sm:$0xff]
        %v364 = vld [vmem:[#allocation2 + $0x30] sm:$0xff]
        %v365 = vld [vmem:[#allocation2 + $0x38] sm:$0xff]
        %v366 = vld [vmem:[#allocation2 + $0x40] sm:$0xff]
        %v367 = vld [vmem:[#allocation2 + $0x48] sm:$0xff]
        %v368 = vld [vmem:[#allocation2 + $0x50] sm:$0xff]
        %v369 = vld [vmem:[#allocation2 + $0x58] sm:$0xff]
        %v370 = vld [vmem:[#allocation2 + $0x60] sm:$0xff]
        %v371 = vld [vmem:[#allocation2 + $0x68] sm:$0xff]
        %v372 = vld [vmem:[#allocation2 + $0x70] sm:$0xff]
        %v373 = vld [vmem:[#allocation2 + $0x78] sm:$0xff]
        %v374 = vld [vmem:[%s287] sm:$0xf]
        %v375 = vld [vmem:[%s287 + $0x4] sm:$0xf]
        %v376 = vld [vmem:[%s287 + $0x8] sm:$0xf]
        %v377 = vld [vmem:[%s287 + $0xc] sm:$0xf]
        %v378 = vld [vmem:[%s287 + $0x10] sm:$0xf]
        %v379 = vld [vmem:[%s287 + $0x14] sm:$0xf]
        %v380 = vld [vmem:[%s287 + $0x18] sm:$0xf]
        %v381 = vld [vmem:[%s287 + $0x1c] sm:$0xf]
        %v382 = vld [vmem:[%s287 + $0x20] sm:$0xf]
        %v383 = vld [vmem:[%s287 + $0x24] sm:$0xf]
        %v384 = vld [vmem:[%s287 + $0x28] sm:$0xf]
        %v385 = vld [vmem:[%s287 + $0x2c] sm:$0xf]
        %v386 = vld [vmem:[%s287 + $0x30] sm:$0xf]
        %v387 = vld [vmem:[%s287 + $0x34] sm:$0xf]
        %v388 = vld [vmem:[%s287 + $0x38] sm:$0xf]
        %v389 = vld [vmem:[%s287 + $0x3c] sm:$0xf]
        %v390 = vunpack.c.l.bf16 %v374
        %v391 = vunpack.c.l.bf16 %v375
        %v392 = vunpack.c.l.bf16 %v376
        %v393 = vunpack.c.l.bf16 %v377
        %v394 = vunpack.c.l.bf16 %v378
        %v395 = vunpack.c.l.bf16 %v379
        %v396 = vunpack.c.l.bf16 %v380
        %v397 = vunpack.c.l.bf16 %v381
        %v398 = vunpack.c.l.bf16 %v382
        %v399 = vunpack.c.l.bf16 %v383
        %v400 = vunpack.c.l.bf16 %v384
        %v401 = vunpack.c.l.bf16 %v385
        %v402 = vunpack.c.l.bf16 %v386
        %v403 = vunpack.c.l.bf16 %v387
        %v404 = vunpack.c.l.bf16 %v388
        %v405 = vunpack.c.l.bf16 %v389
        %v406 = vld [vmem:[%s323] sm:$0xff]
        %v407 = vld [vmem:[%s323 + $0x8] sm:$0xff]
        %v408 = vld [vmem:[%s323 + $0x10] sm:$0xff]
        %v409 = vld [vmem:[%s323 + $0x18] sm:$0xff]
        %v410 = vld [vmem:[%s323 + $0x20] sm:$0xff]
        %v411 = vld [vmem:[%s323 + $0x28] sm:$0xff]
        %v412 = vld [vmem:[%s323 + $0x30] sm:$0xff]
        %v413 = vld [vmem:[%s323 + $0x38] sm:$0xff]
        %v414 = vld [vmem:[%s323 + $0x40] sm:$0xff]
        %v415 = vld [vmem:[%s323 + $0x48] sm:$0xff]
        %v416 = vld [vmem:[%s323 + $0x50] sm:$0xff]
        %v417 = vld [vmem:[%s323 + $0x58] sm:$0xff]
        %v418 = vld [vmem:[%s323 + $0x60] sm:$0xff]
        %v419 = vld [vmem:[%s323 + $0x68] sm:$0xff]
        %v420 = vld [vmem:[%s323 + $0x70] sm:$0xff]
        %v421 = vld [vmem:[%s323 + $0x78] sm:$0xff]
        %422 = vmatprep.subr.mxu0 0.0
        %423 = vmatpush1.msra.mxu0 %v421
        %424 = vmatprep.subr.mxu0 0.0
        %425 = vmatpush1.msra.mxu0 %v420
        %426 = vmatprep.subr.mxu0 0.0
        %427 = vmatpush1.msra.mxu0 %v419
        %428 = vmatprep.subr.mxu0 0.0
        %429 = vmatpush1.msra.mxu0 %v418
        %430 = vmatprep.subr.mxu0 0.0
        %431 = vmatpush1.msra.mxu0 %v417
        %432 = vmatprep.subr.mxu0 0.0
        %433 = vmatpush1.msra.mxu0 %v416
        %434 = vmatprep.subr.mxu0 0.0
        %435 = vmatpush1.msra.mxu0 %v415
        %436 = vmatprep.subr.mxu0 0.0
        %437 = vmatpush1.msra.mxu0 %v414
        %438 = vmatprep.subr.mxu0 0.0
        %439 = vmatpush1.msra.mxu0 %v413
        %440 = vmatprep.subr.mxu0 0.0
        %441 = vmatpush1.msra.mxu0 %v412
        %442 = vmatprep.subr.mxu0 0.0
        %443 = vmatpush1.msra.mxu0 %v411
        %444 = vmatprep.subr.mxu0 0.0
        %445 = vmatpush1.msra.mxu0 %v410
        %446 = vmatprep.subr.mxu0 0.0
        %447 = vmatpush1.msra.mxu0 %v409
        %448 = vmatprep.subr.mxu0 0.0
        %449 = vmatpush1.msra.mxu0 %v408
        %450 = vmatprep.subr.mxu0 0.0
        %451 = vmatpush1.msra.mxu0 %v407
        %452 = vmatprep.subr.mxu0 0.0
        %453 = vmatpush1.msra.mxu0 %v406
        %454 = vmatprep.subr.mxu0 0.0
        %455 = vmatpush2.msra.mxu0 0.0
        %456 = vmatprep.subr.mxu0 0.0
        %457 = vmatpush2.msra.mxu0 0.0
        %458 = vmatprep.subr.mxu0 0.0
        %459 = vmatpush2.msra.mxu0 0.0
        %460 = vmatprep.subr.mxu0 0.0
        %461 = vmatpush2.msra.mxu0 0.0
        %462 = vmatprep.subr.mxu0 0.0
        %463 = vmatpush2.msra.mxu0 0.0
        %464 = vmatprep.subr.mxu0 0.0
        %465 = vmatpush2.msra.mxu0 0.0
        %466 = vmatprep.subr.mxu0 0.0
        %467 = vmatpush2.msra.mxu0 0.0
        %468 = vmatprep.subr.mxu0 0.0
        %469 = vmatpush2.msra.mxu0 0.0
        %470 = vmatprep.subr.mxu0 0.0
        %471 = vmatpush2.msra.mxu0 0.0
        %472 = vmatprep.subr.mxu0 0.0
        %473 = vmatpush2.msra.mxu0 0.0
        %474 = vmatprep.subr.mxu0 0.0
        %475 = vmatpush2.msra.mxu0 0.0
        %476 = vmatprep.subr.mxu0 0.0
        %477 = vmatpush2.msra.mxu0 0.0
        %478 = vmatprep.subr.mxu0 0.0
        %479 = vmatpush2.msra.mxu0 0.0
        %480 = vmatprep.subr.mxu0 0.0
        %481 = vmatpush2.msra.mxu0 0.0
        %482 = vmatprep.subr.mxu0 0.0
        %483 = vmatpush2.msra.mxu0 0.0
        %484 = vmatprep.subr.mxu0 0.0
        %485 = vmatpush2.msra.mxu0 0.0
        %486 = vmatprep.mubr.f32.mxu0 0.0
        %487 = vmatmul.mubr.f32.gmra.mxu0 %v390
        %v488 = vpop.f32.mrf.mxu0
        %v489 = vadd.f32 0.0, %v488
        %v490 = vpop.f32.mrf.mxu0
        %491 = vmatprep.mubr.f32.mxu0 0.0
        %492 = vmatmul.mubr.f32.gmra.mxu0 %v391
        %v493 = vpop.f32.mrf.mxu0
        %v494 = vadd.f32 0.0, %v493
        %v495 = vpop.f32.mrf.mxu0
        %496 = vmatprep.mubr.f32.mxu0 0.0
        %497 = vmatmul.mubr.f32.gmra.mxu0 %v392
        %v498 = vpop.f32.mrf.mxu0
        %v499 = vadd.f32 0.0, %v498
        %v500 = vpop.f32.mrf.mxu0
        %501 = vmatprep.mubr.f32.mxu0 0.0
        %502 = vmatmul.mubr.f32.gmra.mxu0 %v393
        %v503 = vpop.f32.mrf.mxu0
        %v504 = vadd.f32 0.0, %v503
        %v505 = vpop.f32.mrf.mxu0
        %506 = vmatprep.mubr.f32.mxu0 0.0
        %507 = vmatmul.mubr.f32.gmra.mxu0 %v394
        %v508 = vpop.f32.mrf.mxu0
        %v509 = vadd.f32 0.0, %v508
        %v510 = vpop.f32.mrf.mxu0
        %511 = vmatprep.mubr.f32.mxu0 0.0
        %512 = vmatmul.mubr.f32.gmra.mxu0 %v395
        %v513 = vpop.f32.mrf.mxu0
        %v514 = vadd.f32 0.0, %v513
        %v515 = vpop.f32.mrf.mxu0
        %516 = vmatprep.mubr.f32.mxu0 0.0
        %517 = vmatmul.mubr.f32.gmra.mxu0 %v396
        %v518 = vpop.f32.mrf.mxu0
        %v519 = vadd.f32 0.0, %v518
        %v520 = vpop.f32.mrf.mxu0
        %521 = vmatprep.mubr.f32.mxu0 0.0
        %522 = vmatmul.mubr.f32.gmra.mxu0 %v397
        %v523 = vpop.f32.mrf.mxu0
        %v524 = vadd.f32 0.0, %v523
        %v525 = vpop.f32.mrf.mxu0
        %526 = vmatprep.mubr.f32.mxu0 0.0
        %527 = vmatmul.mubr.f32.gmra.mxu0 %v398
        %v528 = vpop.f32.mrf.mxu0
        %v529 = vadd.f32 0.0, %v528
        %v530 = vpop.f32.mrf.mxu0
        %531 = vmatprep.mubr.f32.mxu0 0.0
        %532 = vmatmul.mubr.f32.gmra.mxu0 %v399
        %v533 = vpop.f32.mrf.mxu0
        %v534 = vadd.f32 0.0, %v533
        %v535 = vpop.f32.mrf.mxu0
        %536 = vmatprep.mubr.f32.mxu0 0.0
        %537 = vmatmul.mubr.f32.gmra.mxu0 %v400
        %v538 = vpop.f32.mrf.mxu0
        %v539 = vadd.f32 0.0, %v538
        %v540 = vpop.f32.mrf.mxu0
        %541 = vmatprep.mubr.f32.mxu0 0.0
        %542 = vmatmul.mubr.f32.gmra.mxu0 %v401
        %v543 = vpop.f32.mrf.mxu0
        %v544 = vadd.f32 0.0, %v543
        %v545 = vpop.f32.mrf.mxu0
        %546 = vmatprep.mubr.f32.mxu0 0.0
        %547 = vmatmul.mubr.f32.gmra.mxu0 %v402
        %v548 = vpop.f32.mrf.mxu0
        %v549 = vadd.f32 0.0, %v548
        %v550 = vpop.f32.mrf.mxu0
        %551 = vmatprep.mubr.f32.mxu0 0.0
        %552 = vmatmul.mubr.f32.gmra.mxu0 %v403
        %v553 = vpop.f32.mrf.mxu0
        %v554 = vadd.f32 0.0, %v553
        %v555 = vpop.f32.mrf.mxu0
        %556 = vmatprep.mubr.f32.mxu0 0.0
        %557 = vmatmul.mubr.f32.gmra.mxu0 %v404
        %v558 = vpop.f32.mrf.mxu0
        %v559 = vadd.f32 0.0, %v558
        %v560 = vpop.f32.mrf.mxu0
        %561 = vmatprep.mubr.f32.mxu0 0.0
        %562 = vmatmul.mubr.f32.gmra.mxu0 %v405
        %v563 = vpop.f32.mrf.mxu0
        %v564 = vadd.f32 0.0, %v563
        %v565 = vpop.f32.mrf.mxu0
        %566 = vdwg.mxu0
        %v567 = vadd.f32 %v358, %v489
        %v568 = vadd.f32 %v359, %v494
        %v569 = vadd.f32 %v360, %v499
        %v570 = vadd.f32 %v361, %v504
        %v571 = vadd.f32 %v362, %v509
        %v572 = vadd.f32 %v363, %v514
        %v573 = vadd.f32 %v364, %v519
        %v574 = vadd.f32 %v365, %v524
        %v575 = vadd.f32 %v366, %v529
        %v576 = vadd.f32 %v367, %v534
        %v577 = vadd.f32 %v368, %v539
        %v578 = vadd.f32 %v369, %v544
        %v579 = vadd.f32 %v370, %v549
        %v580 = vadd.f32 %v371, %v554
        %v581 = vadd.f32 %v372, %v559
        %v582 = vadd.f32 %v373, %v564
        %vm583 = vcmask 15360
        %584 = vst.msk [vmem:[#allocation2] sm:$0xff] %vm583, %v567
        %585 = vst.msk [vmem:[#allocation2 + $0x8] sm:$0xff] %vm583, %v568
        %586 = vst.msk [vmem:[#allocation2 + $0x10] sm:$0xff] %vm583, %v569
        %587 = vst.msk [vmem:[#allocation2 + $0x18] sm:$0xff] %vm583, %v570
        %588 = vst.msk [vmem:[#allocation2 + $0x20] sm:$0xff] %vm583, %v571
        %589 = vst.msk [vmem:[#allocation2 + $0x28] sm:$0xff] %vm583, %v572
        %590 = vst.msk [vmem:[#allocation2 + $0x30] sm:$0xff] %vm583, %v573
        %591 = vst.msk [vmem:[#allocation2 + $0x38] sm:$0xff] %vm583, %v574
        %592 = vst.msk [vmem:[#allocation2 + $0x40] sm:$0xff] %vm583, %v575
        %593 = vst.msk [vmem:[#allocation2 + $0x48] sm:$0xff] %vm583, %v576
        %594 = vst.msk [vmem:[#allocation2 + $0x50] sm:$0xff] %vm583, %v577
        %595 = vst.msk [vmem:[#allocation2 + $0x58] sm:$0xff] %vm583, %v578
        %596 = vst.msk [vmem:[#allocation2 + $0x60] sm:$0xff] %vm583, %v579
        %597 = vst.msk [vmem:[#allocation2 + $0x68] sm:$0xff] %vm583, %v580
        %598 = vst.msk [vmem:[#allocation2 + $0x70] sm:$0xff] %vm583, %v581
        %599 = vst.msk [vmem:[#allocation2 + $0x78] sm:$0xff] %vm583, %v582
        %p600 = scmp.eq.s32.totalorder %s19, 1
        // Predicated region
        $region78: #{tpu_custom_call.1} parent=68 // pred_check
          %p601 = pneg %p600
        $region79: #{tpu_custom_call.1} parent=68 // pred_check_branch
          %603 = sbr.rel (%p601) target = $region81
        $region80: #{tpu_custom_call.1} parent=68 // pred_region
          %v604 = vld [vmem:[%s329] sm:$0xff]
          %v605 = vld [vmem:[%s329 + $0x8] sm:$0xff]
          %v606 = vld [vmem:[%s329 + $0x10] sm:$0xff]
          %v607 = vld [vmem:[%s329 + $0x18] sm:$0xff]
          %v608 = vld [vmem:[%s329 + $0x20] sm:$0xff]
          %v609 = vld [vmem:[%s329 + $0x28] sm:$0xff]
          %v610 = vld [vmem:[%s329 + $0x30] sm:$0xff]
          %v611 = vld [vmem:[%s329 + $0x38] sm:$0xff]
          %v612 = vld [vmem:[%s329 + $0x40] sm:$0xff]
          %v613 = vld [vmem:[%s329 + $0x48] sm:$0xff]
          %v614 = vld [vmem:[%s329 + $0x50] sm:$0xff]
          %v615 = vld [vmem:[%s329 + $0x58] sm:$0xff]
          %v616 = vld [vmem:[%s329 + $0x60] sm:$0xff]
          %v617 = vld [vmem:[%s329 + $0x68] sm:$0xff]
          %v618 = vld [vmem:[%s329 + $0x70] sm:$0xff]
          %v619 = vld [vmem:[%s329 + $0x78] sm:$0xff]
          %v620 = vld [vmem:[#allocation2] sm:$0xff]
          %v621 = vld [vmem:[#allocation2 + $0x8] sm:$0xff]
          %v622 = vld [vmem:[#allocation2 + $0x10] sm:$0xff]
          %v623 = vld [vmem:[#allocation2 + $0x18] sm:$0xff]
          %v624 = vld [vmem:[#allocation2 + $0x20] sm:$0xff]
          %v625 = vld [vmem:[#allocation2 + $0x28] sm:$0xff]
          %v626 = vld [vmem:[#allocation2 + $0x30] sm:$0xff]
          %v627 = vld [vmem:[#allocation2 + $0x38] sm:$0xff]
          %v628 = vld [vmem:[#allocation2 + $0x40] sm:$0xff]
          %v629 = vld [vmem:[#allocation2 + $0x48] sm:$0xff]
          %v630 = vld [vmem:[#allocation2 + $0x50] sm:$0xff]
          %v631 = vld [vmem:[#allocation2 + $0x58] sm:$0xff]
          %v632 = vld [vmem:[#allocation2 + $0x60] sm:$0xff]
          %v633 = vld [vmem:[#allocation2 + $0x68] sm:$0xff]
          %v634 = vld [vmem:[#allocation2 + $0x70] sm:$0xff]
          %v635 = vld [vmem:[#allocation2 + $0x78] sm:$0xff]
          %637 = vset.pattern.permute.xlu0 0
          %638 = vperm.xlu0 %637, %v604
          %v639 = vpop.permute.xlu0 %638
          %642 = vset.pattern.permute.xlu0 0
          %643 = vperm.xlu0 %642, %v605
          %v644 = vpop.permute.xlu0 %643
          %647 = vset.pattern.permute.xlu0 0
          %648 = vperm.xlu0 %647, %v606
          %v649 = vpop.permute.xlu0 %648
          %652 = vset.pattern.permute.xlu0 0
          %653 = vperm.xlu0 %652, %v607
          %v654 = vpop.permute.xlu0 %653
          %657 = vset.pattern.permute.xlu0 0
          %658 = vperm.xlu0 %657, %v608
          %v659 = vpop.permute.xlu0 %658
          %662 = vset.pattern.permute.xlu0 0
          %663 = vperm.xlu0 %662, %v609
          %v664 = vpop.permute.xlu0 %663
          %667 = vset.pattern.permute.xlu0 0
          %668 = vperm.xlu0 %667, %v610
          %v669 = vpop.permute.xlu0 %668
          %672 = vset.pattern.permute.xlu0 0
          %673 = vperm.xlu0 %672, %v611
          %v674 = vpop.permute.xlu0 %673
          %677 = vset.pattern.permute.xlu0 0
          %678 = vperm.xlu0 %677, %v612
          %v679 = vpop.permute.xlu0 %678
          %682 = vset.pattern.permute.xlu0 0
          %683 = vperm.xlu0 %682, %v613
          %v684 = vpop.permute.xlu0 %683
          %687 = vset.pattern.permute.xlu0 0
          %688 = vperm.xlu0 %687, %v614
          %v689 = vpop.permute.xlu0 %688
          %692 = vset.pattern.permute.xlu0 0
          %693 = vperm.xlu0 %692, %v615
          %v694 = vpop.permute.xlu0 %693
          %697 = vset.pattern.permute.xlu0 0
          %698 = vperm.xlu0 %697, %v616
          %v699 = vpop.permute.xlu0 %698
          %702 = vset.pattern.permute.xlu0 0
          %703 = vperm.xlu0 %702, %v617
          %v704 = vpop.permute.xlu0 %703
          %707 = vset.pattern.permute.xlu0 0
          %708 = vperm.xlu0 %707, %v618
          %v709 = vpop.permute.xlu0 %708
          %712 = vset.pattern.permute.xlu0 0
          %713 = vperm.xlu0 %712, %v619
          %v714 = vpop.permute.xlu0 %713
          %v716 = vmul.f32 %v639, %v620
          %v717 = vmul.f32 %v644, %v621
          %v718 = vmul.f32 %v649, %v622
          %v719 = vmul.f32 %v654, %v623
          %v720 = vmul.f32 %v659, %v624
          %v721 = vmul.f32 %v664, %v625
          %v722 = vmul.f32 %v669, %v626
          %v723 = vmul.f32 %v674, %v627
          %v724 = vmul.f32 %v679, %v628
          %v725 = vmul.f32 %v684, %v629
          %v726 = vmul.f32 %v689, %v630
          %v727 = vmul.f32 %v694, %v631
          %v728 = vmul.f32 %v699, %v632
          %v729 = vmul.f32 %v704, %v633
          %v730 = vmul.f32 %v709, %v634
          %v731 = vmul.f32 %v714, %v635
          %v732 = vmax.f32 %v716, 0.0
          %v733 = vmax.f32 %v717, 0.0
          %v734 = vmax.f32 %v718, 0.0
          %v735 = vmax.f32 %v719, 0.0
          %v736 = vmax.f32 %v720, 0.0
          %v737 = vmax.f32 %v721, 0.0
          %v738 = vmax.f32 %v722, 0.0
          %v739 = vmax.f32 %v723, 0.0
          %v740 = vmax.f32 %v724, 0.0
          %v741 = vmax.f32 %v725, 0.0
          %v742 = vmax.f32 %v726, 0.0
          %v743 = vmax.f32 %v727, 0.0
          %v744 = vmax.f32 %v728, 0.0
          %v745 = vmax.f32 %v729, 0.0
          %v746 = vmax.f32 %v730, 0.0
          %v747 = vmax.f32 %v731, 0.0
          %v748 = vsel %vm583, %v732, -inf
          %749 = vmax.xlane.f32.xlu0 %v748
          %v750 = vpop.xlane.xlu0 %749
          %v751 = vsel %vm583, %v733, -inf
          %752 = vmax.xlane.f32.xlu0 %v751
          %v753 = vpop.xlane.xlu0 %752
          %v754 = vsel %vm583, %v734, -inf
          %755 = vmax.xlane.f32.xlu0 %v754
          %v756 = vpop.xlane.xlu0 %755
          %v757 = vsel %vm583, %v735, -inf
          %758 = vmax.xlane.f32.xlu0 %v757
          %v759 = vpop.xlane.xlu0 %758
          %v760 = vsel %vm583, %v736, -inf
          %761 = vmax.xlane.f32.xlu0 %v760
          %v762 = vpop.xlane.xlu0 %761
          %v763 = vsel %vm583, %v737, -inf
          %764 = vmax.xlane.f32.xlu0 %v763
          %v765 = vpop.xlane.xlu0 %764
          %v766 = vsel %vm583, %v738, -inf
          %767 = vmax.xlane.f32.xlu0 %v766
          %v768 = vpop.xlane.xlu0 %767
          %v769 = vsel %vm583, %v739, -inf
          %770 = vmax.xlane.f32.xlu0 %v769
          %v771 = vpop.xlane.xlu0 %770
          %v772 = vsel %vm583, %v740, -inf
          %773 = vmax.xlane.f32.xlu0 %v772
          %v774 = vpop.xlane.xlu0 %773
          %v775 = vsel %vm583, %v741, -inf
          %776 = vmax.xlane.f32.xlu0 %v775
          %v777 = vpop.xlane.xlu0 %776
          %v778 = vsel %vm583, %v742, -inf
          %779 = vmax.xlane.f32.xlu0 %v778
          %v780 = vpop.xlane.xlu0 %779
          %v781 = vsel %vm583, %v743, -inf
          %782 = vmax.xlane.f32.xlu0 %v781
          %v783 = vpop.xlane.xlu0 %782
          %v784 = vsel %vm583, %v744, -inf
          %785 = vmax.xlane.f32.xlu0 %v784
          %v786 = vpop.xlane.xlu0 %785
          %v787 = vsel %vm583, %v745, -inf
          %788 = vmax.xlane.f32.xlu0 %v787
          %v789 = vpop.xlane.xlu0 %788
          %v790 = vsel %vm583, %v746, -inf
          %791 = vmax.xlane.f32.xlu0 %v790
          %v792 = vpop.xlane.xlu0 %791
          %v793 = vsel %vm583, %v747, -inf
          %794 = vmax.xlane.f32.xlu0 %v793
          %v795 = vpop.xlane.xlu0 %794
          %v796 = vsub.f32 %v732, %v750
          %v797 = vsub.f32 %v733, %v753
          %v798 = vsub.f32 %v734, %v756
          %v799 = vsub.f32 %v735, %v759
          %v800 = vsub.f32 %v736, %v762
          %v801 = vsub.f32 %v737, %v765
          %v802 = vsub.f32 %v738, %v768
          %v803 = vsub.f32 %v739, %v771
          %v804 = vsub.f32 %v740, %v774
          %v805 = vsub.f32 %v741, %v777
          %v806 = vsub.f32 %v742, %v780
          %v807 = vsub.f32 %v743, %v783
          %v808 = vsub.f32 %v744, %v786
          %v809 = vsub.f32 %v745, %v789
          %v810 = vsub.f32 %v746, %v792
          %v811 = vsub.f32 %v747, %v795
          %v812 = vmul.f32 %v796, 1.442695
          %v813 = vpow.pop %v812
          %v814 = vmul.f32 %v797, 1.442695
          %v815 = vpow.pop %v814
          %v816 = vmul.f32 %v798, 1.442695
          %v817 = vpow.pop %v816
          %v818 = vmul.f32 %v799, 1.442695
          %v819 = vpow.pop %v818
          %v820 = vmul.f32 %v800, 1.442695
          %v821 = vpow.pop %v820
          %v822 = vmul.f32 %v801, 1.442695
          %v823 = vpow.pop %v822
          %v824 = vmul.f32 %v802, 1.442695
          %v825 = vpow.pop %v824
          %v826 = vmul.f32 %v803, 1.442695
          %v827 = vpow.pop %v826
          %v828 = vmul.f32 %v804, 1.442695
          %v829 = vpow.pop %v828
          %v830 = vmul.f32 %v805, 1.442695
          %v831 = vpow.pop %v830
          %v832 = vmul.f32 %v806, 1.442695
          %v833 = vpow.pop %v832
          %v834 = vmul.f32 %v807, 1.442695
          %v835 = vpow.pop %v834
          %v836 = vmul.f32 %v808, 1.442695
          %v837 = vpow.pop %v836
          %v838 = vmul.f32 %v809, 1.442695
          %v839 = vpow.pop %v838
          %v840 = vmul.f32 %v810, 1.442695
          %v841 = vpow.pop %v840
          %v842 = vmul.f32 %v811, 1.442695
          %v843 = vpow.pop %v842
          %v844 = vsel %vm583, %v813, 0.0
          %845 = vadd.xlane.f32.xlu0 %v844
          %v846 = vpop.xlane.xlu0 %845
          %v847 = vsel %vm583, %v815, 0.0
          %848 = vadd.xlane.f32.xlu0 %v847
          %v849 = vpop.xlane.xlu0 %848
          %v850 = vsel %vm583, %v817, 0.0
          %851 = vadd.xlane.f32.xlu0 %v850
          %v852 = vpop.xlane.xlu0 %851
          %v853 = vsel %vm583, %v819, 0.0
          %854 = vadd.xlane.f32.xlu0 %v853
          %v855 = vpop.xlane.xlu0 %854
          %v856 = vsel %vm583, %v821, 0.0
          %857 = vadd.xlane.f32.xlu0 %v856
          %v858 = vpop.xlane.xlu0 %857
          %v859 = vsel %vm583, %v823, 0.0
          %860 = vadd.xlane.f32.xlu0 %v859
          %v861 = vpop.xlane.xlu0 %860
          %v862 = vsel %vm583, %v825, 0.0
          %863 = vadd.xlane.f32.xlu0 %v862
          %v864 = vpop.xlane.xlu0 %863
          %v865 = vsel %vm583, %v827, 0.0
          %866 = vadd.xlane.f32.xlu0 %v865
          %v867 = vpop.xlane.xlu0 %866
          %v868 = vsel %vm583, %v829, 0.0
          %869 = vadd.xlane.f32.xlu0 %v868
          %v870 = vpop.xlane.xlu0 %869
          %v871 = vsel %vm583, %v831, 0.0
          %872 = vadd.xlane.f32.xlu0 %v871
          %v873 = vpop.xlane.xlu0 %872
          %v874 = vsel %vm583, %v833, 0.0
          %875 = vadd.xlane.f32.xlu0 %v874
          %v876 = vpop.xlane.xlu0 %875
          %v877 = vsel %vm583, %v835, 0.0
          %878 = vadd.xlane.f32.xlu0 %v877
          %v879 = vpop.xlane.xlu0 %878
          %v880 = vsel %vm583, %v837, 0.0
          %881 = vadd.xlane.f32.xlu0 %v880
          %v882 = vpop.xlane.xlu0 %881
          %v883 = vsel %vm583, %v839, 0.0
          %884 = vadd.xlane.f32.xlu0 %v883
          %v885 = vpop.xlane.xlu0 %884
          %v886 = vsel %vm583, %v841, 0.0
          %887 = vadd.xlane.f32.xlu0 %v886
          %v888 = vpop.xlane.xlu0 %887
          %v889 = vsel %vm583, %v843, 0.0
          %890 = vadd.xlane.f32.xlu0 %v889
          %v891 = vpop.xlane.xlu0 %890
          %v892 = vrcp.pop %v846
          %v893 = vrcp.pop %v849
          %v894 = vrcp.pop %v852
          %v895 = vrcp.pop %v855
          %v896 = vrcp.pop %v858
          %v897 = vrcp.pop %v861
          %v898 = vrcp.pop %v864
          %v899 = vrcp.pop %v867
          %v900 = vrcp.pop %v870
          %v901 = vrcp.pop %v873
          %v902 = vrcp.pop %v876
          %v903 = vrcp.pop %v879
          %v904 = vrcp.pop %v882
          %v905 = vrcp.pop %v885
          %v906 = vrcp.pop %v888
          %v907 = vrcp.pop %v891
          %v908 = vmul.f32 %v813, %v892
          %v909 = vmul.f32 %v815, %v893
          %v910 = vmul.f32 %v817, %v894
          %v911 = vmul.f32 %v819, %v895
          %v912 = vmul.f32 %v821, %v896
          %v913 = vmul.f32 %v823, %v897
          %v914 = vmul.f32 %v825, %v898
          %v915 = vmul.f32 %v827, %v899
          %v916 = vmul.f32 %v829, %v900
          %v917 = vmul.f32 %v831, %v901
          %v918 = vmul.f32 %v833, %v902
          %v919 = vmul.f32 %v835, %v903
          %v920 = vmul.f32 %v837, %v904
          %v921 = vmul.f32 %v839, %v905
          %v922 = vmul.f32 %v841, %v906
          %v923 = vmul.f32 %v843, %v907
          %924 = vst.msk [vmem:[%s335] sm:$0xff] %vm583, %v908
          %925 = vst.msk [vmem:[%s335 + $0x8] sm:$0xff] %vm583, %v909
          %926 = vst.msk [vmem:[%s335 + $0x10] sm:$0xff] %vm583, %v910
          %927 = vst.msk [vmem:[%s335 + $0x18] sm:$0xff] %vm583, %v911
          %928 = vst.msk [vmem:[%s335 + $0x20] sm:$0xff] %vm583, %v912
          %929 = vst.msk [vmem:[%s335 + $0x28] sm:$0xff] %vm583, %v913
          %930 = vst.msk [vmem:[%s335 + $0x30] sm:$0xff] %vm583, %v914
          %931 = vst.msk [vmem:[%s335 + $0x38] sm:$0xff] %vm583, %v915
          %932 = vst.msk [vmem:[%s335 + $0x40] sm:$0xff] %vm583, %v916
          %933 = vst.msk [vmem:[%s335 + $0x48] sm:$0xff] %vm583, %v917
          %934 = vst.msk [vmem:[%s335 + $0x50] sm:$0xff] %vm583, %v918
          %935 = vst.msk [vmem:[%s335 + $0x58] sm:$0xff] %vm583, %v919
          %936 = vst.msk [vmem:[%s335 + $0x60] sm:$0xff] %vm583, %v920
          %937 = vst.msk [vmem:[%s335 + $0x68] sm:$0xff] %vm583, %v921
          %938 = vst.msk [vmem:[%s335 + $0x70] sm:$0xff] %vm583, %v922
          %939 = vst.msk [vmem:[%s335 + $0x78] sm:$0xff] %vm583, %v923
        $region81: #{tpu_custom_call.1} parent=68 // pred_fallthru
          _
        %s940 = smul.u32 16, %s18
        %p941 = scmp.lt.s32.totalorder %s940, 31
        %s942 = scalar_select %p941, %s940, 31
        %s943 = smul.addr %s942, 8
        %s944 = scalar_lea.vmem %s3, %s943
        // Predicated region
        $region82: #{tpu_custom_call.1} parent=68 // pred_check
          %p945 = pneg %p124
        $region83: #{tpu_custom_call.1} parent=68 // pred_check_branch
          %947 = sbr.rel (%p945) target = $region85
        $region84: #{tpu_custom_call.1} parent=68 // pred_region
          %s948 = smul.u32 16, %s18
        $region85: #{tpu_custom_call.1} parent=68 // pred_fallthru
          _
      $region69: #{tpu_custom_call.1} parent=5 // pred_fallthru
        _
      %p949 = scmp.le.s32.totalorder 2, %s9
      // Predicated region
      $region86: #{tpu_custom_call.1} parent=5 // pred_check
        %p950 = pneg %p949
      $region87: #{tpu_custom_call.1} parent=5 // pred_check_branch
        %952 = sbr.rel (%p950) target = $region89
      $region88: #{tpu_custom_call.1} parent=5 // pred_region
        %s953 = ssub.s32 %s9, 2
        // Predicated region
        $region90: #{tpu_custom_call.1} parent=88 // pred_check
          %p954 = pneg %p130
        $region91: #{tpu_custom_call.1} parent=88 // pred_check_branch
          %956 = sbr.rel (%p954) target = $region93
        $region92: #{tpu_custom_call.1} parent=88 // pred_region
          %s957 = smul.u32 16, %s20
          %p958 = scmp.lt.s32.totalorder %s957, 31
          %s959 = scalar_select %p958, %s957, 31
          %s960 = smul.addr %s959, 8
          %s961 = scalar_lea.vmem %s3, %s960
        $region93: #{tpu_custom_call.1} parent=88 // pred_fallthru
          _
      $region89: #{tpu_custom_call.1} parent=5 // pred_fallthru
        _
    $region6: #{tpu_custom_call.1} parent=1 // loop_footer
      %s13 = sadd.s32 1, %s9
    $region7: #{tpu_custom_call.1} parent=1 // loop_footer_branch
      %8 = sbr.rel target = $region3
    $region8: #{tpu_custom_call.1} parent=1 // loop_exit
      _

</llo_original>
